<compile_context>
chip_gen: v6e
topology: v6e:2x2x1
jax: 0.10.0
libtpu: 0.0.40
codegen_flags: <defaults>
</compile_context>

<pallas_src>
import functools

import jax
import jax.numpy as jnp
from jax.experimental import pallas as pl
from jax.experimental.pallas import tpu as pltpu


def _round_up(x: int, m: int) -> int:
    return ((x + m - 1) // m) * m


def _make_instance_norm_kernel(d_valid: int, d_padded: int):
    """Kernel over a (block_rows, d_padded) tile; reduces only the first
    d_valid feature lanes (the rest are zero padding for lane density)."""
    needs_mask = d_padded != d_valid

    def kernel(x_ref, o_ref):
        x = x_ref[...].astype(jnp.float32)
        if needs_mask:
            lane = jax.lax.broadcasted_iota(jnp.int32, x.shape, 1)
            valid = (lane < d_valid).astype(jnp.float32)
            xv = x * valid
            mean = jnp.sum(xv, axis=1, keepdims=True) * (1.0 / d_valid)
            centered = (x - mean) * valid  # padded lanes -> 0 in output too
        else:
            mean = jnp.mean(x, axis=1, keepdims=True)
            centered = x - mean
        # Unbiased variance (Bessel's correction), matching torch.std default.
        var = jnp.sum(centered * centered, axis=1, keepdims=True) * (
            1.0 / (d_valid - 1)
        )
        std = jnp.sqrt(var) + 1e-5
        inv_std = pl.reciprocal(std, approx=False)  # exact; approx=True ~1e-4 rel
        o_ref[...] = (centered * inv_std).astype(o_ref.dtype)

    return kernel


@functools.partial(jax.jit, static_argnames=("vmem_tile_budget_bytes",))
def instance_norm(
    x: jax.Array, *, vmem_tile_budget_bytes: int = 24 * 1024 * 1024
) -> jax.Array:
    """Row-wise instance norm over the last axis of a 2-D array (N, D)."""
    n, d = x.shape
    assert d >= 2, "torch.std(dim=1, unbiased) is NaN for D == 1"

    itemsize = jnp.dtype(x.dtype).itemsize
    # Sublane packing: 8 rows per vreg tile for 4-byte, 16 for 2-byte, 32 for 1-byte.
    row_align = {4: 8, 2: 16, 1: 32}.get(itemsize, 8)
    lane = 128

    # Lane-dense feature axis (full 128-wide stores even for tiny D).
    d_pad = max(lane, _round_up(d, lane))

    # Size block_rows to the VMEM budget: 2 buffers x (in + out) per tile.
    per_row_bytes = 4 * d_pad * itemsize
    block_rows = max(row_align, (vmem_tile_budget_bytes // per_row_bytes))
    block_rows = max(row_align, (block_rows // row_align) * row_align)
    block_rows = min(block_rows, _round_up(n, row_align))
    # Keep at least 2 grid steps when possible so v7x megacore can shard rows.
    if block_rows >= n and n > row_align:
        block_rows = _round_up(pl.cdiv(n, 2), row_align)

    grid = pl.cdiv(n, block_rows)
    n_pad = grid * block_rows

    x_in = x
    if n_pad != n or d_pad != d:
        # Zero-padded rows normalize independently to 0 (no NaN: std -> 1e-5);
        # padded feature lanes are masked inside the kernel. Both sliced off below.
        x_in = jnp.pad(x, ((0, n_pad - n), (0, d_pad - d)))

    out = pl.pallas_call(
        _make_instance_norm_kernel(d, d_pad),
        out_shape=jax.ShapeDtypeStruct((n_pad, d_pad), x.dtype),
        grid_spec=pltpu.PrefetchScalarGridSpec(
            num_scalar_prefetch=0,
            grid=(grid,),
            in_specs=[pl.BlockSpec((block_rows, d_pad), lambda i: (i, 0))],
            out_specs=pl.BlockSpec((block_rows, d_pad), lambda i: (i, 0)),
        ),
        compiler_params=pltpu.CompilerParams(
            dimension_semantics=("parallel",),
            # Explicit scoped-VMEM limit: big enough for the 24 MiB tile budget,
            # still well under v7x's 64 MiB physical VMEM (v5e/v6e have 128 MiB).
            vmem_limit_bytes=48 * 1024 * 1024,
        ),
    )(x_in)

    if n_pad != n or d_pad != d:
        out = out[:n, :d]
    return out


def _reference(x):
    mean = jnp.mean(x, axis=1, keepdims=True)
    std = jnp.std(x, axis=1, keepdims=True, ddof=1) + 1e-5
    return (x - mean) / std


if __name__ == "__main__":
    key = jax.random.PRNGKey(0)

    # Small synthetic "graph" input: 16 nodes, 32 features each
    # (exercises the lane-padding + masked-reduce path, D < 128).
    x = jax.random.normal(key, (16, 32), dtype=jnp.float32)
    out = jax.block_until_ready(instance_norm(x))
    ref = _reference(x)
    assert out.shape == x.shape
    assert jnp.allclose(out, ref, atol=1e-4, rtol=1e-4), "mismatch vs reference (16,32)"

    # Second small case: N not a multiple of the row tile, D already lane-aligned
    # (exercises the row-padding / cdiv-grid path).
    x2 = jax.random.normal(jax.random.PRNGKey(1), (10, 384), dtype=jnp.float32)
    out2 = jax.block_until_ready(instance_norm(x2))
    ref2 = _reference(x2)
    assert out2.shape == x2.shape
    assert jnp.allclose(out2, ref2, atol=1e-4, rtol=1e-4), "mismatch vs reference (10,384)"

    print("KERNEL_OK")
</pallas_src>

<mosaic_0001>
module attributes {stable_mosaic.version = 11 : i64} {
  func.func @kernel(%arg0: i32, %arg1: memref<8x128xf32, #tpu.memory_space<vmem>>, %arg2: memref<8x128xf32, #tpu.memory_space<vmem>>) attributes {dimension_semantics = [#tpu.dimension_semantics<parallel>], iteration_bounds = array<i64: 2>, scalar_prefetch = 0 : i64, scratch_operands = 0 : i64, tpu.core_type = #tpu.core_type<tc>, window_params = [{transform_indices = @transform_0, window_bounds = array<i64: 8, 128>}, {transform_indices = @transform_1, window_bounds = array<i64: 8, 128>}]} {
    %c0 = arith.constant 0 : index
    %c0_0 = arith.constant 0 : index
    %0 = vector.load %arg1[%c0, %c0_0] : memref<8x128xf32, #tpu.memory_space<vmem>>, vector<8x128xf32>
    %1 = tpu.iota {dimensions = array<i32: 1>} : vector<8x128xi32>
    %c32_i32 = arith.constant 32 : i32
    %2 = vector.broadcast %c32_i32 : i32 to vector<8x128xi32>
    %3 = arith.cmpi slt, %1, %2 : vector<8x128xi32>
    %4 = arith.extui %3 : vector<8x128xi1> to vector<8x128xi32>
    %5 = arith.sitofp %4 : vector<8x128xi32> to vector<8x128xf32>
    %6 = arith.mulf %0, %5 : vector<8x128xf32>
    %cst = arith.constant dense<0.000000e+00> : vector<8xf32>
    %7 = vector.multi_reduction <add>, %6, %cst [1] : vector<8x128xf32> to vector<8xf32>
    %8 = vector.shape_cast %7 : vector<8xf32> to vector<8x1xf32>
    %cst_1 = arith.constant 3.125000e-02 : f32
    %9 = vector.broadcast %cst_1 : f32 to vector<8x1xf32>
    %10 = arith.mulf %8, %9 : vector<8x1xf32>
    %11 = vector.broadcast %10 : vector<8x1xf32> to vector<8x128xf32>
    %12 = arith.subf %0, %11 : vector<8x128xf32>
    %13 = arith.mulf %12, %5 : vector<8x128xf32>
    %14 = arith.mulf %13, %13 : vector<8x128xf32>
    %cst_2 = arith.constant dense<0.000000e+00> : vector<8xf32>
    %15 = vector.multi_reduction <add>, %14, %cst_2 [1] : vector<8x128xf32> to vector<8xf32>
    %16 = vector.shape_cast %15 : vector<8xf32> to vector<8x1xf32>
    %cst_3 = arith.constant 0.0322580636 : f32
    %17 = vector.broadcast %cst_3 : f32 to vector<8x1xf32>
    %18 = arith.mulf %16, %17 : vector<8x1xf32>
    %19 = math.sqrt %18 : vector<8x1xf32>
    %cst_4 = arith.constant 9.99999974E-6 : f32
    %20 = vector.broadcast %cst_4 : f32 to vector<8x1xf32>
    %21 = arith.addf %19, %20 : vector<8x1xf32>
    %22 = tpu.reciprocal %21 : vector<8x1xf32> -> vector<8x1xf32>
    %23 = vector.broadcast %22 : vector<8x1xf32> to vector<8x128xf32>
    %24 = arith.mulf %13, %23 : vector<8x128xf32>
    %c0_5 = arith.constant 0 : index
    %c0_6 = arith.constant 0 : index
    %25 = vector.load %arg2[%c0_5, %c0_6] : memref<8x128xf32, #tpu.memory_space<vmem>>, vector<8x128xf32>
    tpu.vector_store %arg2[%c0_5, %c0_6], %24 {strides = array<i32>} : memref<8x128xf32, #tpu.memory_space<vmem>>, vector<8x128xf32>,
    return
  }
  func.func @transform_0(%arg0: i32) -> (i32, i32) {
    %c0_i32 = arith.constant 0 : i32
    %c0_i32_0 = arith.constant 0 : i32
    return %arg0, %c0_i32 : i32, i32
  }
  func.func @transform_1(%arg0: i32) -> (i32, i32) {
    %c0_i32 = arith.constant 0 : i32
    %c0_i32_0 = arith.constant 0 : i32
    return %arg0, %c0_i32 : i32, i32
  }
}

</mosaic_0001>

<llo_original>
// kernel: instance_norm.1
$region0: #{instance_norm.1}
  #allocation0 [shape = 'u32[]', space=smem, size = 0x4, offset = 0x4, fixed_abs, tag = 'smem constant byte address 0x4 - core index']
  #allocation1 [shape = 'u32[144,128]{1,0:T(1,128)}', space=vmem, size = 0x12000, scoped, tag = 'internal scratch']
  %s0 = inlined_call_operand.vmem [shape: f32[16,128], index: 0, kind: input, shape index: {}]
  %s1 = inlined_call_operand.hbm [shape: f32[16,128], index: 1, kind: output, shape index: {}]
  %s2 = sld [smem:[#allocation0]]
  $region37: #{instance_norm.1} parent=0
    _
  %s4 = ssub.s32 1, %s2
  %s5 = scalar_select 0, %s4, %s2
  $region1: #{instance_norm.1} parent=0
    #allocation2 [shape = 'u8[8192]{0}', space=vmem, size = 0x2000, scoped, tag = 'output window, operand 0']
    #allocation3 [shape = 's32[2]{0}', space=sflag, size = 0x8, scoped, tag = 'scoped memory for instance_norm.1']
    %6 = vsyncpa [#allocation3], 0
    %s7 = scalar_lea.sflag [#allocation3], 1
    %8 = vsyncpa %s7, 0
    loop: start=0, step=1, limit=4
    $region2: #{instance_norm.1} parent=1 // loop_pre_header
      _
    $region3: #{instance_norm.1} parent=1 // loop_header
      %s10 = sphi 0, %s14
      %p11 = scmp.ge.s32.totalorder %s10, 4
      %s20 = sphi 0, %s22
      %s23 = sphi 0, %s20
      %s24 = sphi 0, %s23
      %s40 = sphi 0, %s24
      %s46 = sphi 0, %s48
      %s49 = sphi 0, %s46
      %s50 = sphi 0, %s49
      %s66 = sphi 0, %s50
    $region4: #{instance_norm.1} parent=1 // loop_header_branch
      %13 = sbr.rel (%p11) target = $region8
    $region5: #{instance_norm.1} parent=1 // loop_body
      %s15 = ssub.s32 %s10, 1
      %s16 = ssub.s32 %s10, 2
      %s17 = sadd.s32 %s10, 1
      %s18 = ssub.s32 %s10, %s17
      %p19 = scmp.eq.s32.totalorder %s18, 0
      %s21 = sadd.s32 %s20, 1
      %s22 = scalar_select %p19, %s20, %s21
      %p25 = pneg %p19
      %p26 = scmp.eq.s32.totalorder %s10, 1
      %p27 = por %p25, %p26
      %p28 = scmp.ne.s32.totalorder %s20, %s23
      %p29 = scmp.eq.s32.totalorder %s10, 0
      %p30 = por %p28, %p29
      %p31 = scmp.ne.s32.totalorder %s20, %s23
      %p32 = scmp.eq.s32.totalorder %s15, 1
      %p33 = por %p31, %p32
      %p34 = scmp.ne.s32.totalorder %s23, %s24
      %p35 = scmp.eq.s32.totalorder %s15, 0
      %p36 = por %p34, %p35
      %p37 = scmp.ne.s32.totalorder %s23, %s24
      %p38 = scmp.eq.s32.totalorder %s16, 1
      %p39 = por %p37, %p38
      %p41 = scmp.ne.s32.totalorder %s24, %s40
      %p42 = scmp.eq.s32.totalorder %s16, 0
      %p43 = por %p41, %p42
      %s44 = ssub.s32 %s10, %s17
      %p45 = scmp.eq.s32.totalorder %s44, 0
      %s47 = sadd.s32 %s46, 1
      %s48 = scalar_select %p45, %s46, %s47
      %p51 = pneg %p45
      %p52 = scmp.eq.s32.totalorder %s10, 1
      %p53 = por %p51, %p52
      %p54 = scmp.ne.s32.totalorder %s46, %s49
      %p55 = scmp.eq.s32.totalorder %s10, 0
      %p56 = por %p54, %p55
      %p57 = scmp.ne.s32.totalorder %s46, %s49
      %p58 = scmp.eq.s32.totalorder %s15, 1
      %p59 = por %p57, %p58
      %p60 = scmp.ne.s32.totalorder %s49, %s50
      %p61 = scmp.eq.s32.totalorder %s15, 0
      %p62 = por %p60, %p61
      %p63 = scmp.ne.s32.totalorder %s49, %s50
      %p64 = scmp.eq.s32.totalorder %s16, 1
      %p65 = por %p63, %p64
      %p67 = scmp.ne.s32.totalorder %s50, %s66
      %p68 = scmp.eq.s32.totalorder %s16, 0
      %p69 = por %p67, %p68
      %p70 = scmp.le.s32.totalorder 1, %s10
      %p71 = scmp.lt.s32.totalorder %s10, 3
      %p72 = pnand %p70, %p71
      %p73 = pneg %p72
      // Predicated region
      $region9: #{instance_norm.1} parent=5 // pred_check
        _
      $region10: #{instance_norm.1} parent=5 // pred_check_branch
        %75 = sbr.rel (%p72) target = $region12
      $region11: #{instance_norm.1} parent=5 // pred_region
        %s76 = ssub.s32 %s10, 1
      $region12: #{instance_norm.1} parent=5 // pred_fallthru
        _
      %p77 = scmp.lt.s32.totalorder %s10, 2
      // Predicated region
      $region13: #{instance_norm.1} parent=5 // pred_check
        %p78 = pneg %p77
      $region14: #{instance_norm.1} parent=5 // pred_check_branch
        %80 = sbr.rel (%p78) target = $region16
      $region15: #{instance_norm.1} parent=5 // pred_region
        // Predicated region
        $region17: #{instance_norm.1} parent=15 // pred_check
          %p81 = pneg %p30
        $region18: #{instance_norm.1} parent=15 // pred_check_branch
          %83 = sbr.rel (%p81) target = $region20
        $region19: #{instance_norm.1} parent=15 // pred_region
          %p84 = scmp.lt.s32.totalorder %s10, 1
          %s85 = scalar_select %p84, %s10, 1
          %s86 = smul.addr %s85, 8
          %s87 = scalar_lea.vmem %s0, %s86
        $region20: #{instance_norm.1} parent=15 // pred_fallthru
          _
      $region16: #{instance_norm.1} parent=5 // pred_fallthru
        _
      %p88 = scmp.le.s32.totalorder 1, %s10
      %p89 = scmp.lt.s32.totalorder %s10, 3
      %p90 = pnand %p88, %p89
      %p91 = pneg %p90
      // Predicated region
      $region21: #{instance_norm.1} parent=5 // pred_check
        _
      $region22: #{instance_norm.1} parent=5 // pred_check_branch
        %93 = sbr.rel (%p90) target = $region24
      $region23: #{instance_norm.1} parent=5 // pred_region
        %s94 = ssub.s32 %s10, 1
        %p95 = scmp.lt.s32.totalorder %s15, 1
        %s96 = scalar_select %p95, %s15, 1
        %s97 = smul.addr %s96, 8
        %s98 = scalar_lea.vmem %s0, %s97
        %p99 = pneg %p36
        %p100 = pneg %p33
        %p101 = pneg %p62
        %p102 = pneg %p59
        %s103 = sand.u32 %s49, 1
        %s104 = scalar_lea.sflag [#allocation3], %s103
        %s105 = sand.u32 %s49, 1
        %s106 = smul.addr %s105, 8
        %s107 = scalar_lea.vmem [#allocation2], %s106
        %p108 = scmp.lt.s32.totalorder %s15, 1
        %s109 = scalar_select %p108, %s15, 1
        %s110 = smul.addr %s109, 8
        %s111 = scalar_lea.vmem %s0, %s110
        %v112 = vld [vmem:[%s111] sm:$0xff]
        %v113 = vlaneseq
        %v114 = vand.u32 %v113, 127
        %vm115 = vcmp.lt.s32.totalorder %v114, 32
        %v116 = vsel %vm115, 1, 0
        %v117 = vcvt.s32.f32 %v116
        %v118 = vmul.f32 %v112, %v117
        %119 = vadd.xlane.f32.xlu0 %v118
        %v120 = vpop.xlane.xlu0 %119
        %v121 = vmul.f32 %v120, 0.03125
        %v122 = vsub.f32 %v112, %v121
        %v123 = vmul.f32 %v122, %v117
        %v124 = vmul.f32 %v123, %v123
        %125 = vadd.xlane.f32.xlu0 %v124
        %v126 = vpop.xlane.xlu0 %125
        %v127 = vmul.f32 %v126, 0.032258064
        %v128 = vrsqrt.pop %v127
        %v129 = vmul.f32 %v127, %v128
        %vm130 = vcmp.eq.f32.partialorder %v127, inf
        %v131 = vsel %vm130, %v127, %v129
        %vm132 = vcmp.eq.f32.partialorder %v127, 0.0
        %v133 = vand.u32 %v127, 2147483648
        %v134 = vsel %vm132, %v133, %v131
        %v135 = vadd.f32 %v134, 1e-05
        %v136 = vrcp.pop %v135
        %v137 = vmul.f32 %v123, %v136
        %138 = vst [vmem:[%s107] sm:$0xff] %v137
        %s139 = sand.u32 %s49, 1
        %s140 = scalar_lea.sflag [#allocation3], %s139
        %s141 = sand.u32 %s49, 1
        %s142 = smul.addr %s141, 8
        %s143 = scalar_lea.vmem [#allocation2], %s142
        // Predicated region
        $region25: #{instance_norm.1} parent=23 // pred_check
          %p144 = pneg %p59
        $region26: #{instance_norm.1} parent=23 // pred_check_branch
          %146 = sbr.rel (%p144) target = $region28
        $region27: #{instance_norm.1} parent=23 // pred_region
          %s148 = ssub.s32 128, 128
          %149 = vsyncadd %s140, %s148
          %s150 = smul.addr %s15, 128
          %s151 = scalar_lea.hbm %s1, %s150
          %s153 = sshll.u32 %s143, 4
          %s154 = int_to_ptr.vmem [resolvable:$true] %s153
          %156 = dma.vmem_to_hbm [thread:$0]  %s154, 128, %s151, %s140
        $region28: #{instance_norm.1} parent=23 // pred_fallthru
          _
      $region24: #{instance_norm.1} parent=5 // pred_fallthru
        _
      %p157 = scmp.le.s32.totalorder 2, %s10
      // Predicated region
      $region29: #{instance_norm.1} parent=5 // pred_check
        %p158 = pneg %p157
      $region30: #{instance_norm.1} parent=5 // pred_check_branch
        %160 = sbr.rel (%p158) target = $region32
      $region31: #{instance_norm.1} parent=5 // pred_region
        %s161 = ssub.s32 %s10, 2
        // Predicated region
        $region33: #{instance_norm.1} parent=31 // pred_check
          %p162 = pneg %p65
        $region34: #{instance_norm.1} parent=31 // pred_check_branch
          %164 = sbr.rel (%p162) target = $region36
        $region35: #{instance_norm.1} parent=31 // pred_region
          %s165 = sand.u32 %s50, 1
          %s166 = scalar_lea.sflag [#allocation3], %s165
          %s167 = sand.u32 %s50, 1
          %s168 = smul.addr %s167, 8
          %s169 = scalar_lea.vmem [#allocation2], %s168
          %170 = dma.done %s166, 128
        $region36: #{instance_norm.1} parent=31 // pred_fallthru
          _
      $region32: #{instance_norm.1} parent=5 // pred_fallthru
        _
    $region6: #{instance_norm.1} parent=1 // loop_footer
      %s14 = sadd.s32 1, %s10
    $region7: #{instance_norm.1} parent=1 // loop_footer_branch
      %9 = sbr.rel target = $region3
    $region8: #{instance_norm.1} parent=1 // loop_exit
      _
    %171 = vsyncpa [#allocation3], 1
    %s172 = scalar_lea.sflag [#allocation3], 1
    %173 = vsyncpa %s172, 1

</llo_original>
